<compile_context>
chip_gen: v5e
topology: v5e:2x2
jax: 0.10.0
libtpu: 0.0.40
codegen_flags: <defaults>
</compile_context>

<pallas_src>
import functools

import jax
import jax.numpy as jnp
from jax.experimental import pallas as pl
from jax.experimental.pallas import tpu as pltpu

EPS = 1e-5                      # nn.LayerNorm default
LANES = 128
MAX_TILE_ROWS = 1024
MAX_BLOCK_BYTES = 4 * 1024 * 1024   # per input / output block (f32)


def _round_up(x, m):
    return ((x + m - 1) // m) * m


def _plain_ln_kernel(x_ref, w_ref, b_ref, o_ref, *, dim):
    # x_ref: (tile, dim) -- one LayerNorm row per block row.
    x = x_ref[...].astype(jnp.float32)
    inv_dim = 1.0 / dim
    mean = jnp.sum(x, axis=-1, keepdims=True) * inv_dim
    mean_sq = jnp.sum(x * x, axis=-1, keepdims=True) * inv_dim
    var = mean_sq - mean * mean
    inv = jax.lax.rsqrt(var + EPS)
    o_ref[...] = ((x - mean) * inv * w_ref[...] + b_ref[...]).astype(o_ref.dtype)


def _packed_ln_kernel(x_ref, w_ref, b_ref, seg_ref, o_ref, *, dim):
    # x_ref: (tile, 128) with k = 128 // dim logical rows packed per lane row.
    # seg_ref: (128, 128) block-diagonal 0/1 matrix; x @ seg broadcasts each
    # segment (logical row) sum back across its own dim-wide lane segment, so
    # the whole computation stays lane-dense.  The MXU work is free filler
    # under the HBM-bandwidth roofline; HIGHEST precision keeps f32 accuracy.
    x = x_ref[...].astype(jnp.float32)
    seg = seg_ref[...]
    inv_dim = 1.0 / dim
    s1 = jnp.dot(x, seg, precision=jax.lax.Precision.HIGHEST,
                 preferred_element_type=jnp.float32)
    s2 = jnp.dot(x * x, seg, precision=jax.lax.Precision.HIGHEST,
                 preferred_element_type=jnp.float32)
    mean = s1 * inv_dim
    var = s2 * inv_dim - mean * mean
    inv = jax.lax.rsqrt(var + EPS)
    o_ref[...] = ((x - mean) * inv * w_ref[...] + b_ref[...]).astype(o_ref.dtype)


def _choose_tile_rows(rows, width):
    """Biggest row tile that (a) fits the 4 MiB/block budget, (b) leaves >= 2
    grid steps when possible (v7x megacore), (c) is a multiple of 8."""
    bytes_per_row = width * 4
    cap = max(8, (MAX_BLOCK_BYTES // bytes_per_row) // 8 * 8)
    t = min(MAX_TILE_ROWS, cap)
    if rows >= 16:
        t = min(t, _round_up(pl.cdiv(rows, 2), 8))
    t = min(t, _round_up(rows, 8))
    return max(8, t)


def sparse_tensor_layer_norm(feats, weight, bias):
    """LayerNorm over the last dim of feats (N, dim). Returns float32 (N, dim)."""
    n, dim = feats.shape
    w = weight.reshape(1, dim).astype(jnp.float32)
    b = bias.reshape(1, dim).astype(jnp.float32)

    use_packed = (dim < LANES) and (LANES % dim == 0)
    if use_packed:
        k = LANES // dim
        width = LANES
        w_row = jnp.tile(w, (1, k))
        b_row = jnp.tile(b, (1, k))
        rows = pl.cdiv(n, k)
    else:
        k = 1
        width = dim
        w_row, b_row = w, b
        rows = n

    tile = _choose_tile_rows(rows, width)
    padded_rows = _round_up(rows, tile)
    pad_n = padded_rows * k - n

    x = feats                      # any float dtype; cast to f32 in-kernel
    if pad_n:
        x = jnp.pad(x, ((0, pad_n), (0, 0)))
    if use_packed:
        x = x.reshape(padded_rows, width)

    grid = (padded_rows // tile,)
    in_specs = [
        pl.BlockSpec((tile, width), lambda i: (i, 0)),
        pl.BlockSpec((1, width), lambda i: (0, 0)),   # weight (fetched once)
        pl.BlockSpec((1, width), lambda i: (0, 0)),   # bias   (fetched once)
    ]
    args = [x, w_row, b_row]

    if use_packed:
        lane = jnp.arange(width, dtype=jnp.int32)
        seg = (lane[:, None] // dim == lane[None, :] // dim).astype(jnp.float32)
        in_specs.append(pl.BlockSpec((width, width), lambda i: (0, 0)))
        args.append(seg)
        kernel = functools.partial(_packed_ln_kernel, dim=dim)
    else:
        kernel = functools.partial(_plain_ln_kernel, dim=dim)

    out = pl.pallas_call(
        kernel,
        out_shape=jax.ShapeDtypeStruct((padded_rows, width), jnp.float32),
        grid_spec=pltpu.PrefetchScalarGridSpec(
            num_scalar_prefetch=0,
            grid=grid,
            in_specs=in_specs,
            out_specs=pl.BlockSpec((tile, width), lambda i: (i, 0)),
        ),
        compiler_params=pltpu.CompilerParams(
            dimension_semantics=("parallel",),
            vmem_limit_bytes=32 * 1024 * 1024,
        ),
    )(*args)

    if use_packed:
        out = out.reshape(padded_rows * k, dim)
    return out[:n]


def _reference(feats, weight, bias):
    x = feats.astype(jnp.float32)
    mean = jnp.mean(x, axis=-1, keepdims=True)
    var = jnp.mean((x - mean) ** 2, axis=-1, keepdims=True)
    return ((x - mean) * jax.lax.rsqrt(var + EPS)
            * weight.astype(jnp.float32) + bias.astype(jnp.float32))


if __name__ == "__main__":
    key = jax.random.PRNGKey(0)
    k_x, k_w, k_b, k_x2, k_w2, k_b2 = jax.random.split(key, 6)

    # Case 1: small sparse point cloud, dim < 128 -> lane-packed path.
    N, DIM = 64, 32
    feats = jax.random.normal(k_x, (N, DIM), dtype=jnp.float32)
    weight = jnp.ones((DIM,), jnp.float32) + 0.1 * jax.random.normal(k_w, (DIM,))
    bias = 0.1 * jax.random.normal(k_b, (DIM,))

    out = jax.block_until_ready(sparse_tensor_layer_norm(feats, weight, bias))
    ref = _reference(feats, weight, bias)
    assert out.dtype == jnp.float32 and out.shape == (N, DIM)
    assert jnp.allclose(out, ref, atol=1e-4, rtol=1e-4), \
        float(jnp.max(jnp.abs(out - ref)))

    # Case 2: dim >= 128, N not a multiple of the tile -> plain path + padding.
    N2, DIM2 = 40, 256
    feats2 = jax.random.normal(k_x2, (N2, DIM2), dtype=jnp.float32)
    weight2 = jnp.ones((DIM2,), jnp.float32) + 0.1 * jax.random.normal(k_w2, (DIM2,))
    bias2 = 0.1 * jax.random.normal(k_b2, (DIM2,))

    out2 = jax.block_until_ready(sparse_tensor_layer_norm(feats2, weight2, bias2))
    ref2 = _reference(feats2, weight2, bias2)
    assert out2.dtype == jnp.float32 and out2.shape == (N2, DIM2)
    assert jnp.allclose(out2, ref2, atol=1e-4, rtol=1e-4), \
        float(jnp.max(jnp.abs(out2 - ref2)))

    print("KERNEL_OK")
</pallas_src>

<mosaic_0001>
module attributes {stable_mosaic.version = 11 : i64} {
  func.func @_packed_ln_kernel(%arg0: i32, %arg1: memref<8x128xf32, #tpu.memory_space<vmem>>, %arg2: memref<1x128xf32, #tpu.memory_space<vmem>>, %arg3: memref<1x128xf32, #tpu.memory_space<vmem>>, %arg4: memref<128x128xf32, #tpu.memory_space<vmem>>, %arg5: memref<8x128xf32, #tpu.memory_space<vmem>>) attributes {dimension_semantics = [#tpu.dimension_semantics<parallel>], iteration_bounds = array<i64: 2>, scalar_prefetch = 0 : i64, scratch_operands = 0 : i64, tpu.core_type = #tpu.core_type<tc>, window_params = [{transform_indices = @transform_0, window_bounds = array<i64: 8, 128>}, {pipeline_mode = #tpu.pipeline_mode<synchronous>, transform_indices = @transform_1, window_bounds = array<i64: 1, 128>}, {pipeline_mode = #tpu.pipeline_mode<synchronous>, transform_indices = @transform_2, window_bounds = array<i64: 1, 128>}, {pipeline_mode = #tpu.pipeline_mode<synchronous>, transform_indices = @transform_3, window_bounds = array<i64: 128, 128>}, {transform_indices = @transform_4, window_bounds = array<i64: 8, 128>}]} {
    %c0 = arith.constant 0 : index
    %c0_0 = arith.constant 0 : index
    %0 = vector.load %arg1[%c0, %c0_0] : memref<8x128xf32, #tpu.memory_space<vmem>>, vector<8x128xf32>
    %c0_1 = arith.constant 0 : index
    %c0_2 = arith.constant 0 : index
    %1 = vector.load %arg4[%c0_1, %c0_2] : memref<128x128xf32, #tpu.memory_space<vmem>>, vector<128x128xf32>
    %cst = arith.constant dense<0.000000e+00> : vector<8x128xf32>
    %2 = tpu.matmul %0, %1, %cst {dimension_numbers = #tpu.dot_dimension_numbers<[1], [0], [0], [1], [0, 0, 1, 1], [], []>, precision = #tpu.contract_precision<fp32>} : vector<8x128xf32>, vector<128x128xf32>, vector<8x128xf32> -> vector<8x128xf32>
    %3 = arith.mulf %0, %0 : vector<8x128xf32>
    %cst_3 = arith.constant dense<0.000000e+00> : vector<8x128xf32>
    %4 = tpu.matmul %3, %1, %cst_3 {dimension_numbers = #tpu.dot_dimension_numbers<[1], [0], [0], [1], [0, 0, 1, 1], [], []>, precision = #tpu.contract_precision<fp32>} : vector<8x128xf32>, vector<128x128xf32>, vector<8x128xf32> -> vector<8x128xf32>
    %cst_4 = arith.constant 3.125000e-02 : f32
    %5 = vector.broadcast %cst_4 : f32 to vector<8x128xf32>
    %6 = arith.mulf %2, %5 : vector<8x128xf32>
    %cst_5 = arith.constant 3.125000e-02 : f32
    %7 = vector.broadcast %cst_5 : f32 to vector<8x128xf32>
    %8 = arith.mulf %4, %7 : vector<8x128xf32>
    %9 = arith.mulf %6, %6 : vector<8x128xf32>
    %10 = arith.subf %8, %9 : vector<8x128xf32>
    %cst_6 = arith.constant 9.99999974E-6 : f32
    %11 = vector.broadcast %cst_6 : f32 to vector<8x128xf32>
    %12 = arith.addf %10, %11 : vector<8x128xf32>
    %13 = math.rsqrt %12 : vector<8x128xf32>
    %14 = arith.subf %0, %6 : vector<8x128xf32>
    %15 = arith.mulf %14, %13 : vector<8x128xf32>
    %c0_7 = arith.constant 0 : index
    %c0_8 = arith.constant 0 : index
    %16 = vector.load %arg2[%c0_7, %c0_8] : memref<1x128xf32, #tpu.memory_space<vmem>>, vector<1x128xf32>
    %17 = vector.broadcast %16 : vector<1x128xf32> to vector<8x128xf32>
    %18 = arith.mulf %15, %17 : vector<8x128xf32>
    %c0_9 = arith.constant 0 : index
    %c0_10 = arith.constant 0 : index
    %19 = vector.load %arg3[%c0_9, %c0_10] : memref<1x128xf32, #tpu.memory_space<vmem>>, vector<1x128xf32>
    %20 = vector.broadcast %19 : vector<1x128xf32> to vector<8x128xf32>
    %21 = arith.addf %18, %20 : vector<8x128xf32>
    %c0_11 = arith.constant 0 : index
    %c0_12 = arith.constant 0 : index
    %22 = vector.load %arg5[%c0_11, %c0_12] : memref<8x128xf32, #tpu.memory_space<vmem>>, vector<8x128xf32>
    tpu.vector_store %arg5[%c0_11, %c0_12], %21 {strides = array<i32>} : memref<8x128xf32, #tpu.memory_space<vmem>>, vector<8x128xf32>,
    return
  }
  func.func @transform_0(%arg0: i32) -> (i32, i32) {
    %c0_i32 = arith.constant 0 : i32
    %c0_i32_0 = arith.constant 0 : i32
    return %arg0, %c0_i32 : i32, i32
  }
  func.func @transform_1(%arg0: i32) -> (i32, i32) {
    %c0_i32 = arith.constant 0 : i32
    %c0_i32_0 = arith.constant 0 : i32
    %c0_i32_1 = arith.constant 0 : i32
    return %c0_i32, %c0_i32_0 : i32, i32
  }
  func.func @transform_2(%arg0: i32) -> (i32, i32) {
    %c0_i32 = arith.constant 0 : i32
    %c0_i32_0 = arith.constant 0 : i32
    %c0_i32_1 = arith.constant 0 : i32
    return %c0_i32, %c0_i32_0 : i32, i32
  }
  func.func @transform_3(%arg0: i32) -> (i32, i32) {
    %c0_i32 = arith.constant 0 : i32
    %c0_i32_0 = arith.constant 0 : i32
    %c0_i32_1 = arith.constant 0 : i32
    return %c0_i32, %c0_i32_0 : i32, i32
  }
  func.func @transform_4(%arg0: i32) -> (i32, i32) {
    %c0_i32 = arith.constant 0 : i32
    %c0_i32_0 = arith.constant 0 : i32
    return %arg0, %c0_i32 : i32, i32
  }
}

</mosaic_0001>

<llo_original>
// kernel: tpu_custom_call.1
$region0: #{tpu_custom_call.1}
  #allocation0 [shape = 'u32[]', space=smem, size = 0x4, offset = 0x4, fixed_abs, tag = 'smem constant byte address 0x4 - core index']
  #allocation1 [shape = 'u32[72,128]{1,0:T(1,128)}', space=vmem, size = 0x9000, scoped, tag = 'internal scratch']
  %s0 = inlined_call_operand.hbm [shape: f32[16,128], index: 0, kind: input, shape index: {}]
  %s1 = inlined_call_operand.hbm [shape: f32[1,128], index: 1, kind: input, shape index: {}]
  %s2 = inlined_call_operand.vmem [shape: f32[1,128], index: 2, kind: input, shape index: {}]
  %s3 = inlined_call_operand.hbm [shape: f32[128,128], index: 3, kind: input, shape index: {}]
  %s4 = inlined_call_operand.hbm [shape: f32[16,128], index: 4, kind: output, shape index: {}]
  %s5 = sld [smem:[#allocation0]]
  $region61: #{tpu_custom_call.1} parent=0
    _
  %s7 = ssub.s32 1, %s5
  %s8 = scalar_select 0, %s7, %s5
  $region1: #{tpu_custom_call.1} parent=0
    #allocation2 [shape = 'u8[8192]{0}', space=vmem, size = 0x2000, scoped, tag = 'input window, operand 0']
    #allocation3 [shape = 's32[2]{0}', space=sflag, size = 0x8, scoped, tag = 'scoped memory for tpu_custom_call.1']
    #allocation4 [shape = 's32[2]{0}', space=sflag, size = 0x8, scoped, tag = 'scoped memory for tpu_custom_call.1']
    #allocation5 [shape = 'u8[512]{0}', space=vmem, size = 0x400, scoped, tag = 'input window, operand 1, single buffered']
    #allocation6 [shape = 's32[1]{0}', space=sflag, size = 0x4, scoped, tag = 'scoped memory for tpu_custom_call.1']
    #allocation7 [shape = 'u8[65536]{0}', space=vmem, size = 0x10000, scoped, tag = 'input window, operand 3, single buffered']
    #allocation8 [shape = 'u8[8192]{0}', space=vmem, size = 0x2000, scoped, tag = 'output window, operand 0']
    %9 = vsyncpa [#allocation3], 0
    %s10 = scalar_lea.sflag [#allocation3], 1
    %11 = vsyncpa %s10, 0
    %12 = vsyncpa [#allocation6], 0
    %13 = vsyncpa [#allocation4], 0
    %s14 = scalar_lea.sflag [#allocation4], 1
    %15 = vsyncpa %s14, 0
    loop: start=0, step=1, limit=4
    $region2: #{tpu_custom_call.1} parent=1 // loop_pre_header
      _
    $region3: #{tpu_custom_call.1} parent=1 // loop_header
      %s17 = sphi 0, %s21
      %p18 = scmp.ge.s32.totalorder %s17, 4
      %s27 = sphi 0, %s29
      %s30 = sphi 0, %s27
      %s31 = sphi 0, %s30
      %s47 = sphi 0, %s31
      %s51 = sphi 0, %s51
      %s53 = sphi 0, %s51
      %s54 = sphi 0, %s53
      %s68 = sphi 0, %s54
      %s72 = sphi 0, %s72
      %s74 = sphi 0, %s72
      %s75 = sphi 0, %s74
      %s89 = sphi 0, %s75
      %s93 = sphi 0, %s93
      %s95 = sphi 0, %s93
      %s96 = sphi 0, %s95
      %s110 = sphi 0, %s96
      %s116 = sphi 0, %s118
      %s119 = sphi 0, %s116
      %s120 = sphi 0, %s119
      %s136 = sphi 0, %s120
    $region4: #{tpu_custom_call.1} parent=1 // loop_header_branch
      %20 = sbr.rel (%p18) target = $region8
    $region5: #{tpu_custom_call.1} parent=1 // loop_body
      %s22 = ssub.s32 %s17, 1
      %s23 = ssub.s32 %s17, 2
      %s24 = sadd.s32 %s17, 1
      %s25 = ssub.s32 %s17, %s24
      %p26 = scmp.eq.s32.totalorder %s25, 0
      %s28 = sadd.s32 %s27, 1
      %s29 = scalar_select %p26, %s27, %s28
      %p32 = pneg %p26
      %p33 = scmp.eq.s32.totalorder %s17, 1
      %p34 = por %p32, %p33
      %p35 = scmp.ne.s32.totalorder %s27, %s30
      %p36 = scmp.eq.s32.totalorder %s17, 0
      %p37 = por %p35, %p36
      %p38 = scmp.ne.s32.totalorder %s27, %s30
      %p39 = scmp.eq.s32.totalorder %s22, 1
      %p40 = por %p38, %p39
      %p41 = scmp.ne.s32.totalorder %s30, %s31
      %p42 = scmp.eq.s32.totalorder %s22, 0
      %p43 = por %p41, %p42
      %p44 = scmp.ne.s32.totalorder %s30, %s31
      %p45 = scmp.eq.s32.totalorder %s23, 1
      %p46 = por %p44, %p45
      %p48 = scmp.ne.s32.totalorder %s31, %s47
      %p49 = scmp.eq.s32.totalorder %s23, 0
      %p50 = por %p48, %p49
      %s52 = sadd.s32 %s51, 1
      %p55 = scmp.eq.s32.totalorder %s17, 1
      %p56 = scmp.ne.s32.totalorder %s51, %s53
      %p57 = scmp.eq.s32.totalorder %s17, 0
      %p58 = por %p56, %p57
      %p59 = scmp.ne.s32.totalorder %s51, %s53
      %p60 = scmp.eq.s32.totalorder %s22, 1
      %p61 = por %p59, %p60
      %p62 = scmp.ne.s32.totalorder %s53, %s54
      %p63 = scmp.eq.s32.totalorder %s22, 0
      %p64 = por %p62, %p63
      %p65 = scmp.ne.s32.totalorder %s53, %s54
      %p66 = scmp.eq.s32.totalorder %s23, 1
      %p67 = por %p65, %p66
      %p69 = scmp.ne.s32.totalorder %s54, %s68
      %p70 = scmp.eq.s32.totalorder %s23, 0
      %p71 = por %p69, %p70
      %s73 = sadd.s32 %s72, 1
      %p76 = scmp.eq.s32.totalorder %s17, 1
      %p77 = scmp.ne.s32.totalorder %s72, %s74
      %p78 = scmp.eq.s32.totalorder %s17, 0
      %p79 = por %p77, %p78
      %p80 = scmp.ne.s32.totalorder %s72, %s74
      %p81 = scmp.eq.s32.totalorder %s22, 1
      %p82 = por %p80, %p81
      %p83 = scmp.ne.s32.totalorder %s74, %s75
      %p84 = scmp.eq.s32.totalorder %s22, 0
      %p85 = por %p83, %p84
      %p86 = scmp.ne.s32.totalorder %s74, %s75
      %p87 = scmp.eq.s32.totalorder %s23, 1
      %p88 = por %p86, %p87
      %p90 = scmp.ne.s32.totalorder %s75, %s89
      %p91 = scmp.eq.s32.totalorder %s23, 0
      %p92 = por %p90, %p91
      %s94 = sadd.s32 %s93, 1
      %p97 = scmp.eq.s32.totalorder %s17, 1
      %p98 = scmp.ne.s32.totalorder %s93, %s95
      %p99 = scmp.eq.s32.totalorder %s17, 0
      %p100 = por %p98, %p99
      %p101 = scmp.ne.s32.totalorder %s93, %s95
      %p102 = scmp.eq.s32.totalorder %s22, 1
      %p103 = por %p101, %p102
      %p104 = scmp.ne.s32.totalorder %s95, %s96
      %p105 = scmp.eq.s32.totalorder %s22, 0
      %p106 = por %p104, %p105
      %p107 = scmp.ne.s32.totalorder %s95, %s96
      %p108 = scmp.eq.s32.totalorder %s23, 1
      %p109 = por %p107, %p108
      %p111 = scmp.ne.s32.totalorder %s96, %s110
      %p112 = scmp.eq.s32.totalorder %s23, 0
      %p113 = por %p111, %p112
      %s114 = ssub.s32 %s17, %s24
      %p115 = scmp.eq.s32.totalorder %s114, 0
      %s117 = sadd.s32 %s116, 1
      %s118 = scalar_select %p115, %s116, %s117
      %p121 = pneg %p115
      %p122 = scmp.eq.s32.totalorder %s17, 1
      %p123 = por %p121, %p122
      %p124 = scmp.ne.s32.totalorder %s116, %s119
      %p125 = scmp.eq.s32.totalorder %s17, 0
      %p126 = por %p124, %p125
      %p127 = scmp.ne.s32.totalorder %s116, %s119
      %p128 = scmp.eq.s32.totalorder %s22, 1
      %p129 = por %p127, %p128
      %p130 = scmp.ne.s32.totalorder %s119, %s120
      %p131 = scmp.eq.s32.totalorder %s22, 0
      %p132 = por %p130, %p131
      %p133 = scmp.ne.s32.totalorder %s119, %s120
      %p134 = scmp.eq.s32.totalorder %s23, 1
      %p135 = por %p133, %p134
      %p137 = scmp.ne.s32.totalorder %s120, %s136
      %p138 = scmp.eq.s32.totalorder %s23, 0
      %p139 = por %p137, %p138
      %p140 = scmp.le.s32.totalorder 1, %s17
      %p141 = scmp.lt.s32.totalorder %s17, 3
      %p142 = pnand %p140, %p141
      %p143 = pneg %p142
      // Predicated region
      $region9: #{tpu_custom_call.1} parent=5 // pred_check
        _
      $region10: #{tpu_custom_call.1} parent=5 // pred_check_branch
        %145 = sbr.rel (%p142) target = $region12
      $region11: #{tpu_custom_call.1} parent=5 // pred_region
        %s146 = ssub.s32 %s17, 1
        // Predicated region
        $region13: #{tpu_custom_call.1} parent=11 // pred_check
          %p147 = pneg %p64
        $region14: #{tpu_custom_call.1} parent=11 // pred_check_branch
          %149 = sbr.rel (%p147) target = $region16
        $region15: #{tpu_custom_call.1} parent=11 // pred_region
          %151 = vsyncadd [#allocation6], 0
          %s153 = sshll.u32 %s1, 4
          %s154 = int_to_ptr.hbm [resolvable:$true] %s153
          %s155 = sshll.u32 [#allocation5], 4
          %s156 = int_to_ptr.vmem [resolvable:$true] %s155
          %158 = dma.hbm_to_vmem [thread:$0]  %s154, 16, %s156, [#allocation6]
        $region16: #{tpu_custom_call.1} parent=11 // pred_fallthru
          _
        // Predicated region
        $region17: #{tpu_custom_call.1} parent=11 // pred_check
          %p159 = pneg %p85
        $region18: #{tpu_custom_call.1} parent=11 // pred_check_branch
          %161 = sbr.rel (%p159) target = $region20
        $region19: #{tpu_custom_call.1} parent=11 // pred_region
          _
        $region20: #{tpu_custom_call.1} parent=11 // pred_fallthru
          _
        // Predicated region
        $region21: #{tpu_custom_call.1} parent=11 // pred_check
          %p162 = pneg %p106
        $region22: #{tpu_custom_call.1} parent=11 // pred_check_branch
          %164 = sbr.rel (%p162) target = $region24
        $region23: #{tpu_custom_call.1} parent=11 // pred_region
          %166 = vsyncadd [#allocation6], 0
          %s167 = sshll.u32 %s3, 4
          %s168 = int_to_ptr.hbm [resolvable:$true] %s167
          %s169 = sshll.u32 [#allocation7], 4
          %s170 = int_to_ptr.vmem [resolvable:$true] %s169
          %175 = dma.hbm_to_vmem [thread:$0]  %s168, 2048, %s170, [#allocation6], 128, 128, 8
        $region24: #{tpu_custom_call.1} parent=11 // pred_fallthru
          _
      $region12: #{tpu_custom_call.1} parent=5 // pred_fallthru
        _
      %p176 = scmp.lt.s32.totalorder %s17, 2
      // Predicated region
      $region25: #{tpu_custom_call.1} parent=5 // pred_check
        %p177 = pneg %p176
      $region26: #{tpu_custom_call.1} parent=5 // pred_check_branch
        %179 = sbr.rel (%p177) target = $region28
      $region27: #{tpu_custom_call.1} parent=5 // pred_region
        // Predicated region
        $region29: #{tpu_custom_call.1} parent=27 // pred_check
          %p180 = pneg %p37
        $region30: #{tpu_custom_call.1} parent=27 // pred_check_branch
          %182 = sbr.rel (%p180) target = $region32
        $region31: #{tpu_custom_call.1} parent=27 // pred_region
          %s183 = sand.u32 %s27, 1
          %s184 = scalar_lea.sflag [#allocation3], %s183
          %s185 = sand.u32 %s27, 1
          %s186 = smul.addr %s185, 8
          %s187 = scalar_lea.vmem [#allocation2], %s186
          %189 = vsyncadd %s184, 0
          %s190 = smul.addr %s17, 8
          %s191 = scalar_lea.hbm %s0, %s190
          %s193 = sshll.u32 %s191, 4
          %s194 = int_to_ptr.hbm [resolvable:$true] %s193
          %s195 = sshll.u32 %s187, 4
          %s196 = int_to_ptr.vmem [resolvable:$true] %s195
          %198 = dma.hbm_to_vmem [thread:$0]  %s194, 128, %s196, %s184
        $region32: #{tpu_custom_call.1} parent=27 // pred_fallthru
          _
      $region28: #{tpu_custom_call.1} parent=5 // pred_fallthru
        _
      %p199 = scmp.le.s32.totalorder 1, %s17
      %p200 = scmp.lt.s32.totalorder %s17, 3
      %p201 = pnand %p199, %p200
      %p202 = pneg %p201
      // Predicated region
      $region33: #{tpu_custom_call.1} parent=5 // pred_check
        _
      $region34: #{tpu_custom_call.1} parent=5 // pred_check_branch
        %204 = sbr.rel (%p201) target = $region36
      $region35: #{tpu_custom_call.1} parent=5 // pred_region
        %s205 = ssub.s32 %s17, 1
        %s206 = sand.u32 %s30, 1
        %s207 = scalar_lea.sflag [#allocation3], %s206
        %s208 = sand.u32 %s30, 1
        %s209 = smul.addr %s208, 8
        %s210 = scalar_lea.vmem [#allocation2], %s209
        // Predicated region
        $region37: #{tpu_custom_call.1} parent=35 // pred_check
          %p211 = pneg %p43
        $region38: #{tpu_custom_call.1} parent=35 // pred_check_branch
          %213 = sbr.rel (%p211) target = $region40
        $region39: #{tpu_custom_call.1} parent=35 // pred_region
          %215 = dma.done %s207, 128
        $region40: #{tpu_custom_call.1} parent=35 // pred_fallthru
          _
        // Predicated region
        $region41: #{tpu_custom_call.1} parent=35 // pred_check
          %p216 = pneg %p64
        $region42: #{tpu_custom_call.1} parent=35 // pred_check_branch
          %218 = sbr.rel (%p216) target = $region44
        $region43: #{tpu_custom_call.1} parent=35 // pred_region
          %220 = dma.done [#allocation6], 16
        $region44: #{tpu_custom_call.1} parent=35 // pred_fallthru
          _
        // Predicated region
        $region45: #{tpu_custom_call.1} parent=35 // pred_check
          %p221 = pneg %p106
        $region46: #{tpu_custom_call.1} parent=35 // pred_check_branch
          %223 = sbr.rel (%p221) target = $region48
        $region47: #{tpu_custom_call.1} parent=35 // pred_region
          %225 = dma.done [#allocation6], 2048
        $region48: #{tpu_custom_call.1} parent=35 // pred_fallthru
          _
        %s226 = sand.u32 %s30, 1
        %s227 = scalar_lea.sflag [#allocation3], %s226
        %s228 = sand.u32 %s30, 1
        %s229 = smul.addr %s228, 8
        %s230 = scalar_lea.vmem [#allocation2], %s229
        %p231 = pneg %p43
        %p232 = pneg %p40
        %p233 = pneg %p64
        %p234 = pneg %p61
        %p235 = pneg %p85
        %p236 = pneg %p82
        %p237 = pneg %p106
        %p238 = pneg %p103
        %p239 = pneg %p132
        %p240 = pneg %p129
        %s241 = sand.u32 %s119, 1
        %s242 = scalar_lea.sflag [#allocation4], %s241
        %s243 = sand.u32 %s119, 1
        %s244 = smul.addr %s243, 8
        %s245 = scalar_lea.vmem [#allocation8], %s244
        %v246 = vld [vmem:[%s210] sm:$0xff]
        %v247 = vld [vmem:[#allocation7] sm:$0xff]
        %v248 = vld [vmem:[#allocation7 + $0x8] sm:$0xff]
        %v249 = vld [vmem:[#allocation7 + $0x10] sm:$0xff]
        %v250 = vld [vmem:[#allocation7 + $0x18] sm:$0xff]
        %v251 = vld [vmem:[#allocation7 + $0x20] sm:$0xff]
        %v252 = vld [vmem:[#allocation7 + $0x28] sm:$0xff]
        %v253 = vld [vmem:[#allocation7 + $0x30] sm:$0xff]
        %v254 = vld [vmem:[#allocation7 + $0x38] sm:$0xff]
        %v255 = vld [vmem:[#allocation7 + $0x40] sm:$0xff]
        %v256 = vld [vmem:[#allocation7 + $0x48] sm:$0xff]
        %v257 = vld [vmem:[#allocation7 + $0x50] sm:$0xff]
        %v258 = vld [vmem:[#allocation7 + $0x58] sm:$0xff]
        %v259 = vld [vmem:[#allocation7 + $0x60] sm:$0xff]
        %v260 = vld [vmem:[#allocation7 + $0x68] sm:$0xff]
        %v261 = vld [vmem:[#allocation7 + $0x70] sm:$0xff]
        %v262 = vld [vmem:[#allocation7 + $0x78] sm:$0xff]
        %v263 = vand.u32 %v262, 4294901760
        %264 = vmatpush.msra.mxu0 %v263
        %v265 = vand.u32 %v261, 4294901760
        %266 = vmatpush.msra.mxu0 %v265
        %v267 = vand.u32 %v260, 4294901760
        %268 = vmatpush.msra.mxu0 %v267
        %v269 = vand.u32 %v259, 4294901760
        %270 = vmatpush.msra.mxu0 %v269
        %v271 = vand.u32 %v258, 4294901760
        %272 = vmatpush.msra.mxu0 %v271
        %v273 = vand.u32 %v257, 4294901760
        %274 = vmatpush.msra.mxu0 %v273
        %v275 = vand.u32 %v256, 4294901760
        %276 = vmatpush.msra.mxu0 %v275
        %v277 = vand.u32 %v255, 4294901760
        %278 = vmatpush.msra.mxu0 %v277
        %v279 = vand.u32 %v254, 4294901760
        %280 = vmatpush.msra.mxu0 %v279
        %v281 = vand.u32 %v253, 4294901760
        %282 = vmatpush.msra.mxu0 %v281
        %v283 = vand.u32 %v252, 4294901760
        %284 = vmatpush.msra.mxu0 %v283
        %v285 = vand.u32 %v251, 4294901760
        %286 = vmatpush.msra.mxu0 %v285
        %v287 = vand.u32 %v250, 4294901760
        %288 = vmatpush.msra.mxu0 %v287
        %v289 = vand.u32 %v249, 4294901760
        %290 = vmatpush.msra.mxu0 %v289
        %v291 = vand.u32 %v248, 4294901760
        %292 = vmatpush.msra.mxu0 %v291
        %v293 = vand.u32 %v247, 4294901760
        %294 = vmatpush.msra.mxu0 %v293
        %v295 = vand.u32 %v246, 4294901760
        %v296 = vsub.f32 %v246, %v295
        %v297 = vand.u32 %v296, 4294901760
        %v298 = vsub.f32 %v296, %v297
        %v299 = vand.u32 %v298, 4294901760
        %300 = vmatmul.f32.gmra.mxu0 %v299
        %v301 = vpop.f32.mrf.mxu0
        %v302 = vadd.f32 0.0, %v301
        %303 = vdwg.mxu0
        %v304 = vand.u32 %v262, 4294901760
        %v305 = vsub.f32 %v262, %v304
        %v306 = vand.u32 %v305, 4294901760
        %v307 = vsub.f32 %v305, %v306
        %v308 = vand.u32 %v307, 4294901760
        %309 = vmatpush.msra.mxu0 %v308
        %v310 = vand.u32 %v261, 4294901760
        %v311 = vsub.f32 %v261, %v310
        %v312 = vand.u32 %v311, 4294901760
        %v313 = vsub.f32 %v311, %v312
        %v314 = vand.u32 %v313, 4294901760
        %315 = vmatpush.msra.mxu0 %v314
        %v316 = vand.u32 %v260, 4294901760
        %v317 = vsub.f32 %v260, %v316
        %v318 = vand.u32 %v317, 4294901760
        %v319 = vsub.f32 %v317, %v318
        %v320 = vand.u32 %v319, 4294901760
        %321 = vmatpush.msra.mxu0 %v320
        %v322 = vand.u32 %v259, 4294901760
        %v323 = vsub.f32 %v259, %v322
        %v324 = vand.u32 %v323, 4294901760
        %v325 = vsub.f32 %v323, %v324
        %v326 = vand.u32 %v325, 4294901760
        %327 = vmatpush.msra.mxu0 %v326
        %v328 = vand.u32 %v258, 4294901760
        %v329 = vsub.f32 %v258, %v328
        %v330 = vand.u32 %v329, 4294901760
        %v331 = vsub.f32 %v329, %v330
        %v332 = vand.u32 %v331, 4294901760
        %333 = vmatpush.msra.mxu0 %v332
        %v334 = vand.u32 %v257, 4294901760
        %v335 = vsub.f32 %v257, %v334
        %v336 = vand.u32 %v335, 4294901760
        %v337 = vsub.f32 %v335, %v336
        %v338 = vand.u32 %v337, 4294901760
        %339 = vmatpush.msra.mxu0 %v338
        %v340 = vand.u32 %v256, 4294901760
        %v341 = vsub.f32 %v256, %v340
        %v342 = vand.u32 %v341, 4294901760
        %v343 = vsub.f32 %v341, %v342
        %v344 = vand.u32 %v343, 4294901760
        %345 = vmatpush.msra.mxu0 %v344
        %v346 = vand.u32 %v255, 4294901760
        %v347 = vsub.f32 %v255, %v346
        %v348 = vand.u32 %v347, 4294901760
        %v349 = vsub.f32 %v347, %v348
        %v350 = vand.u32 %v349, 4294901760
        %351 = vmatpush.msra.mxu0 %v350
        %v352 = vand.u32 %v254, 4294901760
        %v353 = vsub.f32 %v254, %v352
        %v354 = vand.u32 %v353, 4294901760
        %v355 = vsub.f32 %v353, %v354
        %v356 = vand.u32 %v355, 4294901760
        %357 = vmatpush.msra.mxu0 %v356
        %v358 = vand.u32 %v253, 4294901760
        %v359 = vsub.f32 %v253, %v358
        %v360 = vand.u32 %v359, 4294901760
        %v361 = vsub.f32 %v359, %v360
        %v362 = vand.u32 %v361, 4294901760
        %363 = vmatpush.msra.mxu0 %v362
        %v364 = vand.u32 %v252, 4294901760
        %v365 = vsub.f32 %v252, %v364
        %v366 = vand.u32 %v365, 4294901760
        %v367 = vsub.f32 %v365, %v366
        %v368 = vand.u32 %v367, 4294901760
        %369 = vmatpush.msra.mxu0 %v368
        %v370 = vand.u32 %v251, 4294901760
        %v371 = vsub.f32 %v251, %v370
        %v372 = vand.u32 %v371, 4294901760
        %v373 = vsub.f32 %v371, %v372
        %v374 = vand.u32 %v373, 4294901760
        %375 = vmatpush.msra.mxu0 %v374
        %v376 = vand.u32 %v250, 4294901760
        %v377 = vsub.f32 %v250, %v376
        %v378 = vand.u32 %v377, 4294901760
        %v379 = vsub.f32 %v377, %v378
        %v380 = vand.u32 %v379, 4294901760
        %381 = vmatpush.msra.mxu0 %v380
        %v382 = vand.u32 %v249, 4294901760
        %v383 = vsub.f32 %v249, %v382
        %v384 = vand.u32 %v383, 4294901760
        %v385 = vsub.f32 %v383, %v384
        %v386 = vand.u32 %v385, 4294901760
        %387 = vmatpush.msra.mxu0 %v386
        %v388 = vand.u32 %v248, 4294901760
        %v389 = vsub.f32 %v248, %v388
        %v390 = vand.u32 %v389, 4294901760
        %v391 = vsub.f32 %v389, %v390
        %v392 = vand.u32 %v391, 4294901760
        %393 = vmatpush.msra.mxu0 %v392
        %v394 = vand.u32 %v247, 4294901760
        %v395 = vsub.f32 %v247, %v394
        %v396 = vand.u32 %v395, 4294901760
        %v397 = vsub.f32 %v395, %v396
        %v398 = vand.u32 %v397, 4294901760
        %399 = vmatpush.msra.mxu0 %v398
        %v400 = vand.u32 %v246, 4294901760
        %401 = vmatmul.f32.gmra.mxu0 %v400
        %v402 = vpop.f32.mrf.mxu0
        %v403 = vadd.f32 %v302, %v402
        %404 = vdwg.mxu0
        %v405 = vand.u32 %v262, 4294901760
        %v406 = vsub.f32 %v262, %v405
        %407 = vmatpush.msra.mxu0 %v406
        %v408 = vand.u32 %v261, 4294901760
        %v409 = vsub.f32 %v261, %v408
        %410 = vmatpush.msra.mxu0 %v409
        %v411 = vand.u32 %v260, 4294901760
        %v412 = vsub.f32 %v260, %v411
        %413 = vmatpush.msra.mxu0 %v412
        %v414 = vand.u32 %v259, 4294901760
        %v415 = vsub.f32 %v259, %v414
        %416 = vmatpush.msra.mxu0 %v415
        %v417 = vand.u32 %v258, 4294901760
        %v418 = vsub.f32 %v258, %v417
        %419 = vmatpush.msra.mxu0 %v418
        %v420 = vand.u32 %v257, 4294901760
        %v421 = vsub.f32 %v257, %v420
        %422 = vmatpush.msra.mxu0 %v421
        %v423 = vand.u32 %v256, 4294901760
        %v424 = vsub.f32 %v256, %v423
        %425 = vmatpush.msra.mxu0 %v424
        %v426 = vand.u32 %v255, 4294901760
        %v427 = vsub.f32 %v255, %v426
        %428 = vmatpush.msra.mxu0 %v427
        %v429 = vand.u32 %v254, 4294901760
        %v430 = vsub.f32 %v254, %v429
        %431 = vmatpush.msra.mxu0 %v430
        %v432 = vand.u32 %v253, 4294901760
        %v433 = vsub.f32 %v253, %v432
        %434 = vmatpush.msra.mxu0 %v433
        %v435 = vand.u32 %v252, 4294901760
        %v436 = vsub.f32 %v252, %v435
        %437 = vmatpush.msra.mxu0 %v436
        %v438 = vand.u32 %v251, 4294901760
        %v439 = vsub.f32 %v251, %v438
        %440 = vmatpush.msra.mxu0 %v439
        %v441 = vand.u32 %v250, 4294901760
        %v442 = vsub.f32 %v250, %v441
        %443 = vmatpush.msra.mxu0 %v442
        %v444 = vand.u32 %v249, 4294901760
        %v445 = vsub.f32 %v249, %v444
        %446 = vmatpush.msra.mxu0 %v445
        %v447 = vand.u32 %v248, 4294901760
        %v448 = vsub.f32 %v248, %v447
        %449 = vmatpush.msra.mxu0 %v448
        %v450 = vand.u32 %v247, 4294901760
        %v451 = vsub.f32 %v247, %v450
        %452 = vmatpush.msra.mxu0 %v451
        %v453 = vand.u32 %v246, 4294901760
        %v454 = vsub.f32 %v246, %v453
        %455 = vmatmul.f32.gmra.mxu0 %v454
        %v456 = vpop.f32.mrf.mxu0
        %v457 = vadd.f32 %v403, %v456
        %458 = vdwg.mxu0
        %v459 = vand.u32 %v262, 4294901760
        %460 = vmatpush.msra.mxu0 %v459
        %v461 = vand.u32 %v261, 4294901760
        %462 = vmatpush.msra.mxu0 %v461
        %v463 = vand.u32 %v260, 4294901760
        %464 = vmatpush.msra.mxu0 %v463
        %v465 = vand.u32 %v259, 4294901760
        %466 = vmatpush.msra.mxu0 %v465
        %v467 = vand.u32 %v258, 4294901760
        %468 = vmatpush.msra.mxu0 %v467
        %v469 = vand.u32 %v257, 4294901760
        %470 = vmatpush.msra.mxu0 %v469
        %v471 = vand.u32 %v256, 4294901760
        %472 = vmatpush.msra.mxu0 %v471
        %v473 = vand.u32 %v255, 4294901760
        %474 = vmatpush.msra.mxu0 %v473
        %v475 = vand.u32 %v254, 4294901760
        %476 = vmatpush.msra.mxu0 %v475
        %v477 = vand.u32 %v253, 4294901760
        %478 = vmatpush.msra.mxu0 %v477
        %v479 = vand.u32 %v252, 4294901760
        %480 = vmatpush.msra.mxu0 %v479
        %v481 = vand.u32 %v251, 4294901760
        %482 = vmatpush.msra.mxu0 %v481
        %v483 = vand.u32 %v250, 4294901760
        %484 = vmatpush.msra.mxu0 %v483
        %v485 = vand.u32 %v249, 4294901760
        %486 = vmatpush.msra.mxu0 %v485
        %v487 = vand.u32 %v248, 4294901760
        %488 = vmatpush.msra.mxu0 %v487
        %v489 = vand.u32 %v247, 4294901760
        %490 = vmatpush.msra.mxu0 %v489
        %v491 = vand.u32 %v246, 4294901760
        %v492 = vsub.f32 %v246, %v491
        %v493 = vand.u32 %v492, 4294901760
        %494 = vmatmul.f32.gmra.mxu0 %v493
        %v495 = vpop.f32.mrf.mxu0
        %v496 = vadd.f32 %v457, %v495
        %497 = vdwg.mxu0
        %v498 = vand.u32 %v262, 4294901760
        %v499 = vsub.f32 %v262, %v498
        %v500 = vand.u32 %v499, 4294901760
        %501 = vmatpush.msra.mxu0 %v500
        %v502 = vand.u32 %v261, 4294901760
        %v503 = vsub.f32 %v261, %v502
        %v504 = vand.u32 %v503, 4294901760
        %505 = vmatpush.msra.mxu0 %v504
        %v506 = vand.u32 %v260, 4294901760
        %v507 = vsub.f32 %v260, %v506
        %v508 = vand.u32 %v507, 4294901760
        %509 = vmatpush.msra.mxu0 %v508
        %v510 = vand.u32 %v259, 4294901760
        %v511 = vsub.f32 %v259, %v510
        %v512 = vand.u32 %v511, 4294901760
        %513 = vmatpush.msra.mxu0 %v512
        %v514 = vand.u32 %v258, 4294901760
        %v515 = vsub.f32 %v258, %v514
        %v516 = vand.u32 %v515, 4294901760
        %517 = vmatpush.msra.mxu0 %v516
        %v518 = vand.u32 %v257, 4294901760
        %v519 = vsub.f32 %v257, %v518
        %v520 = vand.u32 %v519, 4294901760
        %521 = vmatpush.msra.mxu0 %v520
        %v522 = vand.u32 %v256, 4294901760
        %v523 = vsub.f32 %v256, %v522
        %v524 = vand.u32 %v523, 4294901760
        %525 = vmatpush.msra.mxu0 %v524
        %v526 = vand.u32 %v255, 4294901760
        %v527 = vsub.f32 %v255, %v526
        %v528 = vand.u32 %v527, 4294901760
        %529 = vmatpush.msra.mxu0 %v528
        %v530 = vand.u32 %v254, 4294901760
        %v531 = vsub.f32 %v254, %v530
        %v532 = vand.u32 %v531, 4294901760
        %533 = vmatpush.msra.mxu0 %v532
        %v534 = vand.u32 %v253, 4294901760
        %v535 = vsub.f32 %v253, %v534
        %v536 = vand.u32 %v535, 4294901760
        %537 = vmatpush.msra.mxu0 %v536
        %v538 = vand.u32 %v252, 4294901760
        %v539 = vsub.f32 %v252, %v538
        %v540 = vand.u32 %v539, 4294901760
        %541 = vmatpush.msra.mxu0 %v540
        %v542 = vand.u32 %v251, 4294901760
        %v543 = vsub.f32 %v251, %v542
        %v544 = vand.u32 %v543, 4294901760
        %545 = vmatpush.msra.mxu0 %v544
        %v546 = vand.u32 %v250, 4294901760
        %v547 = vsub.f32 %v250, %v546
        %v548 = vand.u32 %v547, 4294901760
        %549 = vmatpush.msra.mxu0 %v548
        %v550 = vand.u32 %v249, 4294901760
        %v551 = vsub.f32 %v249, %v550
        %v552 = vand.u32 %v551, 4294901760
        %553 = vmatpush.msra.mxu0 %v552
        %v554 = vand.u32 %v248, 4294901760
        %v555 = vsub.f32 %v248, %v554
        %v556 = vand.u32 %v555, 4294901760
        %557 = vmatpush.msra.mxu0 %v556
        %v558 = vand.u32 %v247, 4294901760
        %v559 = vsub.f32 %v247, %v558
        %v560 = vand.u32 %v559, 4294901760
        %561 = vmatpush.msra.mxu0 %v560
        %v562 = vand.u32 %v246, 4294901760
        %563 = vmatmul.f32.gmra.mxu0 %v562
        %v564 = vpop.f32.mrf.mxu0
        %v565 = vadd.f32 %v496, %v564
        %566 = vdwg.mxu0
        %v567 = vand.u32 %v262, 4294901760
        %568 = vmatpush.msra.mxu0 %v567
        %v569 = vand.u32 %v261, 4294901760
        %570 = vmatpush.msra.mxu0 %v569
        %v571 = vand.u32 %v260, 4294901760
        %572 = vmatpush.msra.mxu0 %v571
        %v573 = vand.u32 %v259, 4294901760
        %574 = vmatpush.msra.mxu0 %v573
        %v575 = vand.u32 %v258, 4294901760
        %576 = vmatpush.msra.mxu0 %v575
        %v577 = vand.u32 %v257, 4294901760
        %578 = vmatpush.msra.mxu0 %v577
        %v579 = vand.u32 %v256, 4294901760
        %580 = vmatpush.msra.mxu0 %v579
        %v581 = vand.u32 %v255, 4294901760
        %582 = vmatpush.msra.mxu0 %v581
        %v583 = vand.u32 %v254, 4294901760
        %584 = vmatpush.msra.mxu0 %v583
        %v585 = vand.u32 %v253, 4294901760
        %586 = vmatpush.msra.mxu0 %v585
        %v587 = vand.u32 %v252, 4294901760
        %588 = vmatpush.msra.mxu0 %v587
        %v589 = vand.u32 %v251, 4294901760
        %590 = vmatpush.msra.mxu0 %v589
        %v591 = vand.u32 %v250, 4294901760
        %592 = vmatpush.msra.mxu0 %v591
        %v593 = vand.u32 %v249, 4294901760
        %594 = vmatpush.msra.mxu0 %v593
        %v595 = vand.u32 %v248, 4294901760
        %596 = vmatpush.msra.mxu0 %v595
        %v597 = vand.u32 %v247, 4294901760
        %598 = vmatpush.msra.mxu0 %v597
        %v599 = vand.u32 %v246, 4294901760
        %600 = vmatmul.f32.gmra.mxu0 %v599
        %v601 = vpop.f32.mrf.mxu0
        %v602 = vadd.f32 %v565, %v601
        %603 = vdwg.mxu0
        %v604 = vmul.f32 %v246, %v246
        %v605 = vand.u32 %v262, 4294901760
        %606 = vmatpush.msra.mxu0 %v605
        %v607 = vand.u32 %v261, 4294901760
        %608 = vmatpush.msra.mxu0 %v607
        %v609 = vand.u32 %v260, 4294901760
        %610 = vmatpush.msra.mxu0 %v609
        %v611 = vand.u32 %v259, 4294901760
        %612 = vmatpush.msra.mxu0 %v611
        %v613 = vand.u32 %v258, 4294901760
        %614 = vmatpush.msra.mxu0 %v613
        %v615 = vand.u32 %v257, 4294901760
        %616 = vmatpush.msra.mxu0 %v615
        %v617 = vand.u32 %v256, 4294901760
        %618 = vmatpush.msra.mxu0 %v617
        %v619 = vand.u32 %v255, 4294901760
        %620 = vmatpush.msra.mxu0 %v619
        %v621 = vand.u32 %v254, 4294901760
        %622 = vmatpush.msra.mxu0 %v621
        %v623 = vand.u32 %v253, 4294901760
        %624 = vmatpush.msra.mxu0 %v623
        %v625 = vand.u32 %v252, 4294901760
        %626 = vmatpush.msra.mxu0 %v625
        %v627 = vand.u32 %v251, 4294901760
        %628 = vmatpush.msra.mxu0 %v627
        %v629 = vand.u32 %v250, 4294901760
        %630 = vmatpush.msra.mxu0 %v629
        %v631 = vand.u32 %v249, 4294901760
        %632 = vmatpush.msra.mxu0 %v631
        %v633 = vand.u32 %v248, 4294901760
        %634 = vmatpush.msra.mxu0 %v633
        %v635 = vand.u32 %v247, 4294901760
        %636 = vmatpush.msra.mxu0 %v635
        %v637 = vand.u32 %v604, 4294901760
        %v638 = vsub.f32 %v604, %v637
        %v639 = vand.u32 %v638, 4294901760
        %v640 = vsub.f32 %v638, %v639
        %v641 = vand.u32 %v640, 4294901760
        %642 = vmatmul.f32.gmra.mxu0 %v641
        %v643 = vpop.f32.mrf.mxu0
        %v644 = vadd.f32 0.0, %v643
        %645 = vdwg.mxu0
        %v646 = vand.u32 %v262, 4294901760
        %v647 = vsub.f32 %v262, %v646
        %v648 = vand.u32 %v647, 4294901760
        %v649 = vsub.f32 %v647, %v648
        %v650 = vand.u32 %v649, 4294901760
        %651 = vmatpush.msra.mxu0 %v650
        %v652 = vand.u32 %v261, 4294901760
        %v653 = vsub.f32 %v261, %v652
        %v654 = vand.u32 %v653, 4294901760
        %v655 = vsub.f32 %v653, %v654
        %v656 = vand.u32 %v655, 4294901760
        %657 = vmatpush.msra.mxu0 %v656
        %v658 = vand.u32 %v260, 4294901760
        %v659 = vsub.f32 %v260, %v658
        %v660 = vand.u32 %v659, 4294901760
        %v661 = vsub.f32 %v659, %v660
        %v662 = vand.u32 %v661, 4294901760
        %663 = vmatpush.msra.mxu0 %v662
        %v664 = vand.u32 %v259, 4294901760
        %v665 = vsub.f32 %v259, %v664
        %v666 = vand.u32 %v665, 4294901760
        %v667 = vsub.f32 %v665, %v666
        %v668 = vand.u32 %v667, 4294901760
        %669 = vmatpush.msra.mxu0 %v668
        %v670 = vand.u32 %v258, 4294901760
        %v671 = vsub.f32 %v258, %v670
        %v672 = vand.u32 %v671, 4294901760
        %v673 = vsub.f32 %v671, %v672
        %v674 = vand.u32 %v673, 4294901760
        %675 = vmatpush.msra.mxu0 %v674
        %v676 = vand.u32 %v257, 4294901760
        %v677 = vsub.f32 %v257, %v676
        %v678 = vand.u32 %v677, 4294901760
        %v679 = vsub.f32 %v677, %v678
        %v680 = vand.u32 %v679, 4294901760
        %681 = vmatpush.msra.mxu0 %v680
        %v682 = vand.u32 %v256, 4294901760
        %v683 = vsub.f32 %v256, %v682
        %v684 = vand.u32 %v683, 4294901760
        %v685 = vsub.f32 %v683, %v684
        %v686 = vand.u32 %v685, 4294901760
        %687 = vmatpush.msra.mxu0 %v686
        %v688 = vand.u32 %v255, 4294901760
        %v689 = vsub.f32 %v255, %v688
        %v690 = vand.u32 %v689, 4294901760
        %v691 = vsub.f32 %v689, %v690
        %v692 = vand.u32 %v691, 4294901760
        %693 = vmatpush.msra.mxu0 %v692
        %v694 = vand.u32 %v254, 4294901760
        %v695 = vsub.f32 %v254, %v694
        %v696 = vand.u32 %v695, 4294901760
        %v697 = vsub.f32 %v695, %v696
        %v698 = vand.u32 %v697, 4294901760
        %699 = vmatpush.msra.mxu0 %v698
        %v700 = vand.u32 %v253, 4294901760
        %v701 = vsub.f32 %v253, %v700
        %v702 = vand.u32 %v701, 4294901760
        %v703 = vsub.f32 %v701, %v702
        %v704 = vand.u32 %v703, 4294901760
        %705 = vmatpush.msra.mxu0 %v704
        %v706 = vand.u32 %v252, 4294901760
        %v707 = vsub.f32 %v252, %v706
        %v708 = vand.u32 %v707, 4294901760
        %v709 = vsub.f32 %v707, %v708
        %v710 = vand.u32 %v709, 4294901760
        %711 = vmatpush.msra.mxu0 %v710
        %v712 = vand.u32 %v251, 4294901760
        %v713 = vsub.f32 %v251, %v712
        %v714 = vand.u32 %v713, 4294901760
        %v715 = vsub.f32 %v713, %v714
        %v716 = vand.u32 %v715, 4294901760
        %717 = vmatpush.msra.mxu0 %v716
        %v718 = vand.u32 %v250, 4294901760
        %v719 = vsub.f32 %v250, %v718
        %v720 = vand.u32 %v719, 4294901760
        %v721 = vsub.f32 %v719, %v720
        %v722 = vand.u32 %v721, 4294901760
        %723 = vmatpush.msra.mxu0 %v722
        %v724 = vand.u32 %v249, 4294901760
        %v725 = vsub.f32 %v249, %v724
        %v726 = vand.u32 %v725, 4294901760
        %v727 = vsub.f32 %v725, %v726
        %v728 = vand.u32 %v727, 4294901760
        %729 = vmatpush.msra.mxu0 %v728
        %v730 = vand.u32 %v248, 4294901760
        %v731 = vsub.f32 %v248, %v730
        %v732 = vand.u32 %v731, 4294901760
        %v733 = vsub.f32 %v731, %v732
        %v734 = vand.u32 %v733, 4294901760
        %735 = vmatpush.msra.mxu0 %v734
        %v736 = vand.u32 %v247, 4294901760
        %v737 = vsub.f32 %v247, %v736
        %v738 = vand.u32 %v737, 4294901760
        %v739 = vsub.f32 %v737, %v738
        %v740 = vand.u32 %v739, 4294901760
        %741 = vmatpush.msra.mxu0 %v740
        %v742 = vand.u32 %v604, 4294901760
        %743 = vmatmul.f32.gmra.mxu0 %v742
        %v744 = vpop.f32.mrf.mxu0
        %v745 = vadd.f32 %v644, %v744
        %746 = vdwg.mxu0
        %v747 = vand.u32 %v262, 4294901760
        %v748 = vsub.f32 %v262, %v747
        %749 = vmatpush.msra.mxu0 %v748
        %v750 = vand.u32 %v261, 4294901760
        %v751 = vsub.f32 %v261, %v750
        %752 = vmatpush.msra.mxu0 %v751
        %v753 = vand.u32 %v260, 4294901760
        %v754 = vsub.f32 %v260, %v753
        %755 = vmatpush.msra.mxu0 %v754
        %v756 = vand.u32 %v259, 4294901760
        %v757 = vsub.f32 %v259, %v756
        %758 = vmatpush.msra.mxu0 %v757
        %v759 = vand.u32 %v258, 4294901760
        %v760 = vsub.f32 %v258, %v759
        %761 = vmatpush.msra.mxu0 %v760
        %v762 = vand.u32 %v257, 4294901760
        %v763 = vsub.f32 %v257, %v762
        %764 = vmatpush.msra.mxu0 %v763
        %v765 = vand.u32 %v256, 4294901760
        %v766 = vsub.f32 %v256, %v765
        %767 = vmatpush.msra.mxu0 %v766
        %v768 = vand.u32 %v255, 4294901760
        %v769 = vsub.f32 %v255, %v768
        %770 = vmatpush.msra.mxu0 %v769
        %v771 = vand.u32 %v254, 4294901760
        %v772 = vsub.f32 %v254, %v771
        %773 = vmatpush.msra.mxu0 %v772
        %v774 = vand.u32 %v253, 4294901760
        %v775 = vsub.f32 %v253, %v774
        %776 = vmatpush.msra.mxu0 %v775
        %v777 = vand.u32 %v252, 4294901760
        %v778 = vsub.f32 %v252, %v777
        %779 = vmatpush.msra.mxu0 %v778
        %v780 = vand.u32 %v251, 4294901760
        %v781 = vsub.f32 %v251, %v780
        %782 = vmatpush.msra.mxu0 %v781
        %v783 = vand.u32 %v250, 4294901760
        %v784 = vsub.f32 %v250, %v783
        %785 = vmatpush.msra.mxu0 %v784
        %v786 = vand.u32 %v249, 4294901760
        %v787 = vsub.f32 %v249, %v786
        %788 = vmatpush.msra.mxu0 %v787
        %v789 = vand.u32 %v248, 4294901760
        %v790 = vsub.f32 %v248, %v789
        %791 = vmatpush.msra.mxu0 %v790
        %v792 = vand.u32 %v247, 4294901760
        %v793 = vsub.f32 %v247, %v792
        %794 = vmatpush.msra.mxu0 %v793
        %v795 = vand.u32 %v604, 4294901760
        %v796 = vsub.f32 %v604, %v795
        %797 = vmatmul.f32.gmra.mxu0 %v796
        %v798 = vpop.f32.mrf.mxu0
        %v799 = vadd.f32 %v745, %v798
        %800 = vdwg.mxu0
        %v801 = vand.u32 %v262, 4294901760
        %802 = vmatpush.msra.mxu0 %v801
        %v803 = vand.u32 %v261, 4294901760
        %804 = vmatpush.msra.mxu0 %v803
        %v805 = vand.u32 %v260, 4294901760
        %806 = vmatpush.msra.mxu0 %v805
        %v807 = vand.u32 %v259, 4294901760
        %808 = vmatpush.msra.mxu0 %v807
        %v809 = vand.u32 %v258, 4294901760
        %810 = vmatpush.msra.mxu0 %v809
        %v811 = vand.u32 %v257, 4294901760
        %812 = vmatpush.msra.mxu0 %v811
        %v813 = vand.u32 %v256, 4294901760
        %814 = vmatpush.msra.mxu0 %v813
        %v815 = vand.u32 %v255, 4294901760
        %816 = vmatpush.msra.mxu0 %v815
        %v817 = vand.u32 %v254, 4294901760
        %818 = vmatpush.msra.mxu0 %v817
        %v819 = vand.u32 %v253, 4294901760
        %820 = vmatpush.msra.mxu0 %v819
        %v821 = vand.u32 %v252, 4294901760
        %822 = vmatpush.msra.mxu0 %v821
        %v823 = vand.u32 %v251, 4294901760
        %824 = vmatpush.msra.mxu0 %v823
        %v825 = vand.u32 %v250, 4294901760
        %826 = vmatpush.msra.mxu0 %v825
        %v827 = vand.u32 %v249, 4294901760
        %828 = vmatpush.msra.mxu0 %v827
        %v829 = vand.u32 %v248, 4294901760
        %830 = vmatpush.msra.mxu0 %v829
        %v831 = vand.u32 %v247, 4294901760
        %832 = vmatpush.msra.mxu0 %v831
        %v833 = vand.u32 %v604, 4294901760
        %v834 = vsub.f32 %v604, %v833
        %v835 = vand.u32 %v834, 4294901760
        %836 = vmatmul.f32.gmra.mxu0 %v835
        %v837 = vpop.f32.mrf.mxu0
        %v838 = vadd.f32 %v799, %v837
        %839 = vdwg.mxu0
        %v840 = vand.u32 %v262, 4294901760
        %v841 = vsub.f32 %v262, %v840
        %v842 = vand.u32 %v841, 4294901760
        %843 = vmatpush.msra.mxu0 %v842
        %v844 = vand.u32 %v261, 4294901760
        %v845 = vsub.f32 %v261, %v844
        %v846 = vand.u32 %v845, 4294901760
        %847 = vmatpush.msra.mxu0 %v846
        %v848 = vand.u32 %v260, 4294901760
        %v849 = vsub.f32 %v260, %v848
        %v850 = vand.u32 %v849, 4294901760
        %851 = vmatpush.msra.mxu0 %v850
        %v852 = vand.u32 %v259, 4294901760
        %v853 = vsub.f32 %v259, %v852
        %v854 = vand.u32 %v853, 4294901760
        %855 = vmatpush.msra.mxu0 %v854
        %v856 = vand.u32 %v258, 4294901760
        %v857 = vsub.f32 %v258, %v856
        %v858 = vand.u32 %v857, 4294901760
        %859 = vmatpush.msra.mxu0 %v858
        %v860 = vand.u32 %v257, 4294901760
        %v861 = vsub.f32 %v257, %v860
        %v862 = vand.u32 %v861, 4294901760
        %863 = vmatpush.msra.mxu0 %v862
        %v864 = vand.u32 %v256, 4294901760
        %v865 = vsub.f32 %v256, %v864
        %v866 = vand.u32 %v865, 4294901760
        %867 = vmatpush.msra.mxu0 %v866
        %v868 = vand.u32 %v255, 4294901760
        %v869 = vsub.f32 %v255, %v868
        %v870 = vand.u32 %v869, 4294901760
        %871 = vmatpush.msra.mxu0 %v870
        %v872 = vand.u32 %v254, 4294901760
        %v873 = vsub.f32 %v254, %v872
        %v874 = vand.u32 %v873, 4294901760
        %875 = vmatpush.msra.mxu0 %v874
        %v876 = vand.u32 %v253, 4294901760
        %v877 = vsub.f32 %v253, %v876
        %v878 = vand.u32 %v877, 4294901760
        %879 = vmatpush.msra.mxu0 %v878
        %v880 = vand.u32 %v252, 4294901760
        %v881 = vsub.f32 %v252, %v880
        %v882 = vand.u32 %v881, 4294901760
        %883 = vmatpush.msra.mxu0 %v882
        %v884 = vand.u32 %v251, 4294901760
        %v885 = vsub.f32 %v251, %v884
        %v886 = vand.u32 %v885, 4294901760
        %887 = vmatpush.msra.mxu0 %v886
        %v888 = vand.u32 %v250, 4294901760
        %v889 = vsub.f32 %v250, %v888
        %v890 = vand.u32 %v889, 4294901760
        %891 = vmatpush.msra.mxu0 %v890
        %v892 = vand.u32 %v249, 4294901760
        %v893 = vsub.f32 %v249, %v892
        %v894 = vand.u32 %v893, 4294901760
        %895 = vmatpush.msra.mxu0 %v894
        %v896 = vand.u32 %v248, 4294901760
        %v897 = vsub.f32 %v248, %v896
        %v898 = vand.u32 %v897, 4294901760
        %899 = vmatpush.msra.mxu0 %v898
        %v900 = vand.u32 %v247, 4294901760
        %v901 = vsub.f32 %v247, %v900
        %v902 = vand.u32 %v901, 4294901760
        %903 = vmatpush.msra.mxu0 %v902
        %v904 = vand.u32 %v604, 4294901760
        %905 = vmatmul.f32.gmra.mxu0 %v904
        %v906 = vpop.f32.mrf.mxu0
        %v907 = vadd.f32 %v838, %v906
        %908 = vdwg.mxu0
        %v909 = vand.u32 %v262, 4294901760
        %910 = vmatpush.msra.mxu0 %v909
        %v911 = vand.u32 %v261, 4294901760
        %912 = vmatpush.msra.mxu0 %v911
        %v913 = vand.u32 %v260, 4294901760
        %914 = vmatpush.msra.mxu0 %v913
        %v915 = vand.u32 %v259, 4294901760
        %916 = vmatpush.msra.mxu0 %v915
        %v917 = vand.u32 %v258, 4294901760
        %918 = vmatpush.msra.mxu0 %v917
        %v919 = vand.u32 %v257, 4294901760
        %920 = vmatpush.msra.mxu0 %v919
        %v921 = vand.u32 %v256, 4294901760
        %922 = vmatpush.msra.mxu0 %v921
        %v923 = vand.u32 %v255, 4294901760
        %924 = vmatpush.msra.mxu0 %v923
        %v925 = vand.u32 %v254, 4294901760
        %926 = vmatpush.msra.mxu0 %v925
        %v927 = vand.u32 %v253, 4294901760
        %928 = vmatpush.msra.mxu0 %v927
        %v929 = vand.u32 %v252, 4294901760
        %930 = vmatpush.msra.mxu0 %v929
        %v931 = vand.u32 %v251, 4294901760
        %932 = vmatpush.msra.mxu0 %v931
        %v933 = vand.u32 %v250, 4294901760
        %934 = vmatpush.msra.mxu0 %v933
        %v935 = vand.u32 %v249, 4294901760
        %936 = vmatpush.msra.mxu0 %v935
        %v937 = vand.u32 %v248, 4294901760
        %938 = vmatpush.msra.mxu0 %v937
        %v939 = vand.u32 %v247, 4294901760
        %940 = vmatpush.msra.mxu0 %v939
        %v941 = vand.u32 %v604, 4294901760
        %942 = vmatmul.f32.gmra.mxu0 %v941
        %v943 = vpop.f32.mrf.mxu0
        %v944 = vadd.f32 %v907, %v943
        %945 = vdwg.mxu0
        %v946 = vmul.f32 %v602, 0.03125
        %v947 = vmul.f32 %v944, 0.03125
        %v948 = vmul.f32 %v946, %v946
        %v949 = vsub.f32 %v947, %v948
        %v950 = vadd.f32 %v949, 1e-05
        %v951 = vrsqrt.pop %v950
        %v952 = vmul.f32 %v951, %v950
        %v953 = vmul.f32 %v952, %v951
        %v954 = vmul.f32 0.5, %v953
        %v955 = vsub.f32 1.5, %v954
        %v956 = vmul.f32 %v951, %v955
        %vm957 = vweird.f32 %v950
        %vm958 = vweird.f32 %v951
        %vm959 = vmor %vm957, %vm958
        %v960 = vsel %vm959, %v951, %v956
        %v961 = vsub.f32 %v246, %v946
        %v962 = vmul.f32 %v961, %v960
        %v963 = vld [vmem:[#allocation5] sm:$0x1]
        %v965 = vperm.slane %v963, 0
        %v967 = vmul.f32 %v962, %v965
        %v968 = vld [vmem:[%s2] sm:$0x1]
        %v970 = vperm.slane %v968, 0
        %v972 = vadd.f32 %v967, %v970
        %973 = vst [vmem:[%s245] sm:$0xff] %v972
        %s974 = sand.u32 %s119, 1
        %s975 = scalar_lea.sflag [#allocation4], %s974
        %s976 = sand.u32 %s119, 1
        %s977 = smul.addr %s976, 8
        %s978 = scalar_lea.vmem [#allocation8], %s977
        // Predicated region
        $region49: #{tpu_custom_call.1} parent=35 // pred_check
          %p979 = pneg %p129
        $region50: #{tpu_custom_call.1} parent=35 // pred_check_branch
          %981 = sbr.rel (%p979) target = $region52
        $region51: #{tpu_custom_call.1} parent=35 // pred_region
          %983 = vsyncadd %s975, 0
          %s984 = smul.addr %s22, 8
          %s985 = scalar_lea.hbm %s4, %s984
          %s987 = sshll.u32 %s978, 4
          %s988 = int_to_ptr.vmem [resolvable:$true] %s987
          %s989 = sshll.u32 %s985, 4
          %s990 = int_to_ptr.hbm [resolvable:$true] %s989
          %992 = dma.vmem_to_hbm [thread:$0]  %s988, 128, %s990, %s975
        $region52: #{tpu_custom_call.1} parent=35 // pred_fallthru
          _
      $region36: #{tpu_custom_call.1} parent=5 // pred_fallthru
        _
      %p993 = scmp.le.s32.totalorder 2, %s17
      // Predicated region
      $region53: #{tpu_custom_call.1} parent=5 // pred_check
        %p994 = pneg %p993
      $region54: #{tpu_custom_call.1} parent=5 // pred_check_branch
        %996 = sbr.rel (%p994) target = $region56
      $region55: #{tpu_custom_call.1} parent=5 // pred_region
        %s997 = ssub.s32 %s17, 2
        // Predicated region
        $region57: #{tpu_custom_call.1} parent=55 // pred_check
          %p998 = pneg %p135
        $region58: #{tpu_custom_call.1} parent=55 // pred_check_branch
          %1000 = sbr.rel (%p998) target = $region60
        $region59: #{tpu_custom_call.1} parent=55 // pred_region
          %s1001 = sand.u32 %s120, 1
          %s1002 = scalar_lea.sflag [#allocation4], %s1001
          %s1003 = sand.u32 %s120, 1
          %s1004 = smul.addr %s1003, 8
          %s1005 = scalar_lea.vmem [#allocation8], %s1004
          %1007 = dma.done %s1002, 128
        $region60: #{tpu_custom_call.1} parent=55 // pred_fallthru
          _
      $region56: #{tpu_custom_call.1} parent=5 // pred_fallthru
        _
    $region6: #{tpu_custom_call.1} parent=1 // loop_footer
      %s21 = sadd.s32 1, %s17
    $region7: #{tpu_custom_call.1} parent=1 // loop_footer_branch
      %16 = sbr.rel target = $region3
    $region8: #{tpu_custom_call.1} parent=1 // loop_exit
      _
    %1008 = vsyncpa [#allocation3], 1
    %s1009 = scalar_lea.sflag [#allocation3], 1
    %1010 = vsyncpa %s1009, 1
    %1011 = vsyncpa [#allocation6], 1
    %1012 = vsyncpa [#allocation4], 1
    %s1013 = scalar_lea.sflag [#allocation4], 1
    %1014 = vsyncpa %s1013, 1

</llo_original>
